<compile_context>
chip_gen: v7x
topology: tpu7x:2x2x1
jax: 0.10.0
libtpu: 0.0.40
codegen_flags: <defaults>
</compile_context>

<pallas_src>
import functools

import jax
import jax.numpy as jnp
from jax import lax
from jax.experimental import pallas as pl
from jax.experimental.pallas import tpu as pltpu

_LANES = 128
_SUBLANES = 8


def _num_tensorcores() -> int:
    """Best-effort TensorCore count for the leading 'parallel' chunk axis."""
    try:
        info = pltpu.get_tpu_info()
        for name in ("num_cores", "core_count", "num_tensorcores",
                     "tensorcore_count"):
            n = getattr(info, name, None)
            if n is not None:
                n = int(n)
                if n > 0:
                    return min(n, 8)
    except Exception:
        pass
    try:
        n = int(getattr(jax.devices()[0], "num_cores", 0))
        if n > 0:
            return min(n, 8)
    except Exception:
        pass
    # Safe default: with in-kernel tail masking an extra chunk costs at most
    # one redundant (fully-masked) block, and 2 chunks feed both v7x cores.
    return 2


def _xtanh_single_kernel(inv_total, yt_ref, yp_ref, out_ref):
    """Whole problem in one tile: sum(e * tanh(e)) / N directly, no scratch."""
    e = yt_ref[...].astype(jnp.float32) - yp_ref[...].astype(jnp.float32)
    out_ref[0, 0] = jnp.sum(e * jnp.tanh(e)) * jnp.float32(inv_total)


def _xtanh_tiled_kernel(total_rows, block_rows, blocks_per_chunk,
                        yt_ref, yp_ref, part_ref, acc_ref):
    """Per-chunk partial sums for large inputs.

    Each step streams one (block_rows, 128) tile, masks the ragged tail
    in-kernel (so the wrapper never pads / copies the inputs), and folds the
    tile down onto a tiny (8, 128) accumulator with a pure-VALU vreg tree —
    no per-step XLU reduce, no full-tile accumulator read-modify-write.
    tanh rides the EUP slot; the whole loop stays HBM-bound.
    """
    c = pl.program_id(0)
    k = pl.program_id(1)

    @pl.when(k == 0)
    def _():
        acc_ref[...] = jnp.zeros_like(acc_ref)

    # Unclamped global block index.  The index_map clamps the DMA to stay in
    # bounds; this mask zeroes rows past the logical end (including whole
    # redundant blocks from an uneven chunk split).  0 * tanh(0) == 0 -> exact.
    bi = c * blocks_per_chunk + k
    valid_rows = total_rows - bi * block_rows

    e = yt_ref[...].astype(jnp.float32) - yp_ref[...].astype(jnp.float32)
    row_id = lax.broadcasted_iota(jnp.int32, e.shape, 0)
    e = jnp.where(row_id < valid_rows, e, 0.0)   # select kills any garbage bits
    p = e * jnp.tanh(e)

    # Sublane fold: (block_rows, 128) -> (8, 128); splits the leading dim only,
    # so it is vreg-wise adds on the VPU (no cross-lane movement).
    acc_ref[...] += jnp.sum(
        p.reshape(block_rows // _SUBLANES, _SUBLANES, _LANES), axis=0
    )

    @pl.when(k == pl.num_programs(1) - 1)
    def _():
        part_ref[...] = acc_ref[...]


def xtanh_loss(y_t, y_prime_t, *, block_rows=4096):
    """mean((y_t - y_prime_t) * tanh(y_t - y_prime_t)) via Pallas TPU kernels.

    Pass inputs in their native storage dtype (f32 or bf16); the kernel
    upcasts to f32 internally.  block_rows must be a multiple of 8 (use a
    multiple of 16 if you tile bf16 directly).
    """
    assert y_t.shape == y_prime_t.shape
    assert block_rows >= _SUBLANES and block_rows % _SUBLANES == 0
    total = int(y_t.size)
    assert total > 0

    flat_t = y_t.reshape(-1)
    flat_p = y_prime_t.reshape(-1)

    if total <= block_rows * _LANES:
        # ---- Path A: single shot (e.g. the (2,4,16,16) test shape) ---------
        # No accumulator / pl.when plumbing; one grid step, scalar SMEM out.
        min_tile = _SUBLANES * _LANES
        padded = -(-total // min_tile) * min_tile
        pad = padded - total
        if pad:  # tiny arrays only: the copy is negligible and 0*tanh(0)==0
            flat_t = jnp.pad(flat_t, (0, pad))
            flat_p = jnp.pad(flat_p, (0, pad))
        rows = padded // _LANES
        a = flat_t.reshape(rows, _LANES)
        b = flat_p.reshape(rows, _LANES)

        out = pl.pallas_call(
            functools.partial(_xtanh_single_kernel, 1.0 / total),
            out_shape=jax.ShapeDtypeStruct((1, 1), jnp.float32),
            grid_spec=pltpu.PrefetchScalarGridSpec(
                num_scalar_prefetch=0,
                grid=(1,),
                in_specs=[
                    pl.BlockSpec((rows, _LANES), lambda i: (0, 0)),
                    pl.BlockSpec((rows, _LANES), lambda i: (0, 0)),
                ],
                out_specs=pl.BlockSpec(memory_space=pltpu.MemorySpace.SMEM),
            ),
            compiler_params=pltpu.CompilerParams(
                dimension_semantics=("arbitrary",)
            ),
        )(a, b)
        return out[0, 0]

    # ---- Path B: tiled streaming, masked tail, chunked for multi-TC --------
    if total % _LANES:
        # TODO(synk): a truly copy-free sub-128 ragged tail needs a separate
        # tail kernel or 1D manual DMA; pad minimally for this rare case.
        tail_pad = _LANES - (total % _LANES)
        flat_t = jnp.pad(flat_t, (0, tail_pad))
        flat_p = jnp.pad(flat_p, (0, tail_pad))
    rows = flat_t.shape[0] // _LANES          # == ceil(total / 128)
    a = flat_t.reshape(rows, _LANES)          # free reshape, no HBM copy
    b = flat_p.reshape(rows, _LANES)

    num_blocks = -(-rows // block_rows)       # >= 2 on this path
    num_chunks = min(_num_tensorcores(), num_blocks)
    blocks_per_chunk = -(-num_blocks // num_chunks)

    def in_map(c, k):
        # Clamp so the DMA never targets a block fully past the array; the
        # kernel masks the contribution of such redundant steps to zero.
        return (jnp.minimum(c * blocks_per_chunk + k, num_blocks - 1), 0)

    in_spec = pl.BlockSpec((block_rows, _LANES), in_map)
    # Optional v7x tweak (sweep before keeping): pipeline_mode=pl.Buffered(3)
    # on the input specs to smooth DMA issue jitter at short per-step windows.

    # VMEM: 2 inputs x 2 pipeline buffers x (block_rows*128*itemsize) plus the
    # tiny (8,128) accumulator and output block.  f32 @ block_rows=4096 ~= 8 MiB
    # -> under the 16 MiB default scoped VMEM on v5e (32 MiB on v6e/v7x).
    itemsize = jnp.dtype(y_t.dtype).itemsize
    vmem_need = 4 * block_rows * _LANES * itemsize + 2 * _SUBLANES * _LANES * 4
    vmem_limit = None
    if vmem_need > 14 * (1 << 20):            # only ever raise, never lower
        vmem_limit = min(max(vmem_need + (4 << 20), 32 << 20), 64 << 20)

    partials = pl.pallas_call(
        functools.partial(
            _xtanh_tiled_kernel, rows, block_rows, blocks_per_chunk
        ),
        out_shape=jax.ShapeDtypeStruct(
            (num_chunks * _SUBLANES, _LANES), jnp.float32
        ),
        grid_spec=pltpu.PrefetchScalarGridSpec(
            num_scalar_prefetch=0,
            grid=(num_chunks, blocks_per_chunk),
            in_specs=[in_spec, in_spec],
            out_specs=pl.BlockSpec((_SUBLANES, _LANES), lambda c, k: (c, 0)),
            scratch_shapes=[pltpu.VMEM((_SUBLANES, _LANES), jnp.float32)],
        ),
        compiler_params=pltpu.CompilerParams(
            dimension_semantics=("parallel", "arbitrary"),
            vmem_limit_bytes=vmem_limit,
        ),
    )(a, b)
    # Tiny (num_chunks*8, 128) final reduce + divide in XLA.
    return jnp.sum(partials) / jnp.float32(total)


if __name__ == "__main__":
    key = jax.random.PRNGKey(0)
    k1, k2, k3, k4 = jax.random.split(key, 4)

    # Primary check: module-consistent small NCHW shape -> single-shot path.
    shape = (2, 4, 16, 16)
    y_t = jax.random.normal(k1, shape, dtype=jnp.float32)
    y_prime_t = jax.random.normal(k2, shape, dtype=jnp.float32)

    loss = xtanh_loss(y_t, y_prime_t)
    jax.block_until_ready(loss)

    e = y_t - y_prime_t
    ref = jnp.mean(e * jnp.tanh(e))
    assert jnp.allclose(loss, ref, atol=1e-5, rtol=1e-5), (loss, ref)

    # Secondary check: tiled / chunked path with a small block and a row count
    # that is NOT a multiple of block_rows (exercises the in-kernel tail mask
    # and the clamped/overflow blocks of the uneven chunk split).
    shape2 = (2, 4, 32, 32)                     # 8192 elems -> 64 rows of 128
    y2 = jax.random.normal(k3, shape2, dtype=jnp.float32)
    y2p = jax.random.normal(k4, shape2, dtype=jnp.float32)
    loss2 = xtanh_loss(y2, y2p, block_rows=24)  # 64 rows / 24 -> ragged block
    jax.block_until_ready(loss2)
    e2 = y2 - y2p
    ref2 = jnp.mean(e2 * jnp.tanh(e2))
    assert jnp.allclose(loss2, ref2, atol=1e-5, rtol=1e-5), (loss2, ref2)

    print("KERNEL_OK")
</pallas_src>

<mosaic_0001>
module attributes {stable_mosaic.version = 11 : i64} {
  func.func @_xtanh_single_kernel(%arg0: i32, %arg1: memref<16x128xf32, #tpu.memory_space<vmem>>, %arg2: memref<16x128xf32, #tpu.memory_space<vmem>>, %arg3: memref<1x1xf32, #tpu.memory_space<smem>>) attributes {dimension_semantics = [#tpu.dimension_semantics<arbitrary>], iteration_bounds = array<i64: 1>, scalar_prefetch = 0 : i64, scratch_operands = 0 : i64, tpu.core_type = #tpu.core_type<tc>, window_params = [{pipeline_mode = #tpu.pipeline_mode<synchronous>, transform_indices = @transform_0, window_bounds = array<i64: 16, 128>}, {pipeline_mode = #tpu.pipeline_mode<synchronous>, transform_indices = @transform_1, window_bounds = array<i64: 16, 128>}, {transform_indices = @transform_2, window_bounds = array<i64: 1, 1>}]} {
    %c0 = arith.constant 0 : index
    %c0_0 = arith.constant 0 : index
    %0 = vector.load %arg1[%c0, %c0_0] : memref<16x128xf32, #tpu.memory_space<vmem>>, vector<16x128xf32>
    %c0_1 = arith.constant 0 : index
    %c0_2 = arith.constant 0 : index
    %1 = vector.load %arg2[%c0_1, %c0_2] : memref<16x128xf32, #tpu.memory_space<vmem>>, vector<16x128xf32>
    %2 = arith.subf %0, %1 : vector<16x128xf32>
    %3 = math.tanh %2 : vector<16x128xf32>
    %4 = arith.mulf %2, %3 : vector<16x128xf32>
    %5 = vector.shape_cast %4 : vector<16x128xf32> to vector<1x16x128xf32>
    %cst = arith.constant dense<0.000000e+00> : vector<1xf32>
    %6 = vector.multi_reduction <add>, %5, %cst [1, 2] : vector<1x16x128xf32> to vector<1xf32>
    %7 = vector.shape_cast %6 : vector<1xf32> to vector<1x1x1xf32>
    %8 = vector.extract %7[0, 0, 0] : f32 from vector<1x1x1xf32>
    %cst_3 = arith.constant 4.8828125E-4 : f32
    %9 = arith.mulf %8, %cst_3 : f32
    %c0_4 = arith.constant 0 : index
    %c0_5 = arith.constant 0 : index
    %10 = memref.load %arg3[%c0_4, %c0_5] : memref<1x1xf32, #tpu.memory_space<smem>>
    memref.store %9, %arg3[%c0_4, %c0_5] : memref<1x1xf32, #tpu.memory_space<smem>>
    return
  }
  func.func @transform_0(%arg0: i32) -> (i32, i32) {
    %c0_i32 = arith.constant 0 : i32
    %c0_i32_0 = arith.constant 0 : i32
    %c0_i32_1 = arith.constant 0 : i32
    return %c0_i32, %c0_i32_0 : i32, i32
  }
  func.func @transform_1(%arg0: i32) -> (i32, i32) {
    %c0_i32 = arith.constant 0 : i32
    %c0_i32_0 = arith.constant 0 : i32
    %c0_i32_1 = arith.constant 0 : i32
    return %c0_i32, %c0_i32_0 : i32, i32
  }
  func.func @transform_2(%arg0: i32) -> (i32, i32) {
    %c0_i32 = arith.constant 0 : i32
    %c0_i32_0 = arith.constant 0 : i32
    %c0_i32_1 = arith.constant 0 : i32
    return %c0_i32, %c0_i32_0 : i32, i32
  }
}

</mosaic_0001>

<llo_original>
// kernel: tpu_custom_call.1
$region0: #{tpu_custom_call.1}
  #allocation0 [shape = 'u32[]', space=smem, size = 0x4, offset = 0x4, fixed_abs, tag = 'smem constant byte address 0x4 - core index']
  #allocation1 [shape = 'u32[144,128]{1,0:T(1,128)}', space=vmem, size = 0x12000, scoped, tag = 'internal scratch']
  %s0 = inlined_call_operand.hbm [shape: f32[16,128], index: 0, kind: input, shape index: {}]
  %s1 = inlined_call_operand.hbm [shape: f32[16,128], index: 1, kind: input, shape index: {}]
  %s2 = inlined_call_operand.hbm [shape: f32[1,1], index: 2, kind: output, shape index: {}]
  %s3 = sld [smem:[#allocation0]]
  $region26: #{tpu_custom_call.1} parent=0
    _
  %s5 = ssub.s32 1, %s3
  %s6 = scalar_select 0, %s5, %s3
  $region1: #{tpu_custom_call.1} parent=0
    #allocation2 [shape = 'u8[8192]{0}', space=vmem, size = 0x2000, scoped, tag = 'input window, operand 0, single buffered']
    #allocation3 [shape = 's32[1]{0}', space=sflag, size = 0x4, scoped, tag = 'scoped memory for tpu_custom_call.1']
    #allocation4 [shape = 's32[1]{0}', space=sflag, size = 0x4, scoped, tag = 'scoped memory for tpu_custom_call.1']
    #allocation5 [shape = 'u8[8192]{0}', space=vmem, size = 0x2000, scoped, tag = 'input window, operand 1, single buffered']
    #allocation6 [shape = 's32[1]{0}', space=sflag, size = 0x4, scoped, tag = 'scoped memory for tpu_custom_call.1']
    #allocation7 [shape = 'u8[512]{0}', space=smem, size = 0x200, scoped, tag = 'output window, operand 0, single buffered']
    %7 = vsyncpa [#allocation3], 0
    %8 = vsyncpa [#allocation6], 0
    %9 = vsyncpa [#allocation4], 0
    // Predicated region
    $region2: #{tpu_custom_call.1} parent=1 // pred_check
      _
    $region3: #{tpu_custom_call.1} parent=1 // pred_check_branch
      %11 = sbr.rel (0) target = $region5
    $region4: #{tpu_custom_call.1} parent=1 // pred_region
      %s13 = ssub.s32 256, 256
      %14 = vsyncadd [#allocation3], %s13
      %s15 = sshll.u32 [#allocation2], 4
      %s16 = int_to_ptr.vmem [resolvable:$true] %s15
      %21 = dma.hbm_to_vmem [thread:$0]  %s0, 256, %s16, [#allocation3], 128, 128, 8
    $region5: #{tpu_custom_call.1} parent=1 // pred_fallthru
      _
    // Predicated region
    $region6: #{tpu_custom_call.1} parent=1 // pred_check
      _
    $region7: #{tpu_custom_call.1} parent=1 // pred_check_branch
      %23 = sbr.rel (0) target = $region9
    $region8: #{tpu_custom_call.1} parent=1 // pred_region
      %s25 = ssub.s32 256, 256
      %26 = vsyncadd [#allocation6], %s25
      %s27 = sshll.u32 [#allocation5], 4
      %s28 = int_to_ptr.vmem [resolvable:$true] %s27
      %33 = dma.hbm_to_vmem [thread:$0]  %s1, 256, %s28, [#allocation6], 128, 128, 8
    $region9: #{tpu_custom_call.1} parent=1 // pred_fallthru
      _
    // Predicated region
    $region10: #{tpu_custom_call.1} parent=1 // pred_check
      _
    $region11: #{tpu_custom_call.1} parent=1 // pred_check_branch
      %35 = sbr.rel (0) target = $region13
    $region12: #{tpu_custom_call.1} parent=1 // pred_region
      %36 = dma.done [#allocation3], 256
    $region13: #{tpu_custom_call.1} parent=1 // pred_fallthru
      _
    // Predicated region
    $region14: #{tpu_custom_call.1} parent=1 // pred_check
      _
    $region15: #{tpu_custom_call.1} parent=1 // pred_check_branch
      %38 = sbr.rel (0) target = $region17
    $region16: #{tpu_custom_call.1} parent=1 // pred_region
      %39 = dma.done [#allocation6], 256
    $region17: #{tpu_custom_call.1} parent=1 // pred_fallthru
      _
    %v40 = vld [vmem:[#allocation2] sm:$0xff]
    %v41 = vld [vmem:[#allocation2 + $0x8] sm:$0xff]
    %v42 = vld [vmem:[#allocation5] sm:$0xff]
    %v43 = vld [vmem:[#allocation5 + $0x8] sm:$0xff]
    %v44 = vsub.f32 %v40, %v42
    %v45 = vsub.f32 %v41, %v43
    %v46 = vtanh.pop %v44
    %v47 = vtanh.pop %v45
    %v48 = vmul.f32 %v44, %v46
    %v49 = vmul.f32 %v45, %v47
    %v50 = vadd.f32 %v48, %v49
    %51 = vadd.xlane.f32.xlu0 %v50
    %v52 = vpop.xlane.xlu0 %51
    %v53 = vrot.slane %v52, 4
    %v54 = vadd.f32 %v52, %v53
    %v55 = vrot.slane %v54, 2
    %v56 = vadd.f32 %v54, %v55
    %v57 = vrot.slane %v56, 1
    %v58 = vadd.f32 %v56, %v57
    %s59 = vtos %v58
    %s60 = smul.f32 %s59, 0.00048828125
    %s61 = scalar_lea.smem [#allocation7], 0
    %62 = sst [smem:[%s61]] %s60
    // Predicated region
    $region18: #{tpu_custom_call.1} parent=1 // pred_check
      _
    $region19: #{tpu_custom_call.1} parent=1 // pred_check_branch
      %64 = sbr.rel (0) target = $region21
    $region20: #{tpu_custom_call.1} parent=1 // pred_region
      %s66 = ssub.s32 16, 16
      %67 = vsyncadd [#allocation4], %s66
      %70 = dma.smem_to_hbm [#allocation7], 16, %s2, [#allocation4]
    $region21: #{tpu_custom_call.1} parent=1 // pred_fallthru
      _
    // Predicated region
    $region22: #{tpu_custom_call.1} parent=1 // pred_check
      _
    $region23: #{tpu_custom_call.1} parent=1 // pred_check_branch
      %72 = sbr.rel (0) target = $region25
    $region24: #{tpu_custom_call.1} parent=1 // pred_region
      %73 = dma.done [#allocation4], 16
    $region25: #{tpu_custom_call.1} parent=1 // pred_fallthru
      _
    %74 = sfence
    %75 = vsyncpa [#allocation3], 1
    %76 = vsyncpa [#allocation6], 1
    %77 = vsyncpa [#allocation4], 1

</llo_original>
